<compile_context>
chip_gen: v5e
topology: v5e:2x2
jax: 0.10.0
libtpu: 0.0.40
codegen_flags: <defaults>
</compile_context>

<pallas_src>
import functools
import math

import jax
import jax.numpy as jnp
import numpy as np
from jax.experimental import pallas as pl
from jax.experimental.pallas import tpu as pltpu


# ----------------------------------------------------------------------------
# Kernel A: fused InputStream branches + MainStream + T*V pooling accumulator.
# Layout: channels on sublanes, rows (T*V positions) on lanes (lane-dense).
# ----------------------------------------------------------------------------
def stream_pool_kernel(x_ref, wbd_ref, bin_ref, wm_ref, bm_ref,
                       y_ref, psum_ref, acc_ref, *, tv_valid, tv_padded):
    # x_ref:    (I*C, RT)   bf16  one row-tile of one (n, m) clip, all branches
    # wbd_ref:  (I*H, I*C)  bf16  block-diagonal per-branch 1x1 conv weights
    # bin_ref:  (I*H, 1)    f32   per-branch biases (branch-major)
    # wm_ref:   (Cm, I*H)   bf16  main-stream 1x1 conv weights (transposed)
    # bm_ref:   (Cm, 1)     f32
    # y_ref:    (1, Cm, RT) bf16  feature tile (lane-dense, unmasked stores)
    # psum_ref: (1, 1, Cm)  f32   per-(n,m) sum over T*V (resident across rt)
    # acc_ref:  (Cm, RT)    f32   VMEM scratch: element-wise pooling accumulator
    rt = pl.program_id(1)
    row_tile = x_ref.shape[1]

    # block-diag contraction == concat_i( relu(W_i x_i + b_i) ) without concat
    h = jnp.dot(wbd_ref[...], x_ref[...], preferred_element_type=jnp.float32)
    h = jnp.maximum(h + bin_ref[...], 0.0)                 # InputStream ReLU (f32)

    y = jnp.dot(wm_ref[...], h.astype(wm_ref.dtype),
                preferred_element_type=jnp.float32)
    y = jnp.maximum(y + bm_ref[...], 0.0)                  # MainStream ReLU (f32)

    y_ref[0] = y.astype(y_ref.dtype)                       # bf16, 128-lane stores

    # --- fused global-avg-pool numerator ------------------------------------
    @pl.when(rt == 0)
    def _():
        acc_ref[...] = jnp.zeros_like(acc_ref)

    if tv_padded != tv_valid:
        # mask padded (zero-filled) columns out of the pooling sum
        col = rt * row_tile + jax.lax.broadcasted_iota(jnp.int32, y.shape, 1)
        y_pool = jnp.where(col < tv_valid, y, 0.0)
    else:
        y_pool = y
    acc_ref[...] += y_pool                                  # plain VPU add

    # one XLU lane-reduce per (n, m), in the epilogue only
    @pl.when(rt == pl.num_programs(1) - 1)
    def _():
        psum_ref[...] = jnp.sum(acc_ref[...], axis=1)[None, None, :]


# ----------------------------------------------------------------------------
# Kernel B: mean over M (+ deferred 1/(M*T*V) scale) + Linear classifier.
# (Tiny problem; kept as a Pallas kernel but intentionally not tuned further.)
# ----------------------------------------------------------------------------
def classifier_kernel(psum_ref, wc_ref, bc_ref, out_ref, *, inv_count):
    # psum_ref: (N, M, Cm)  per-(n,m) sums over T*V
    # wc_ref:   (Cm, K)     pre-transposed Linear weight
    # bc_ref:   (1, K)
    # out_ref:  (N, K)
    pooled = jnp.sum(psum_ref[...], axis=1) * inv_count     # (N, Cm) global avg pool
    out_ref[...] = (
        jnp.dot(pooled, wc_ref[...], preferred_element_type=jnp.float32)
        + bc_ref[...]
    )


def _pick_row_tile(tvp, max_tile=1024):
    # tvp is already padded to a multiple of 128; pick the largest divisor
    # that is a multiple of 128 and <= max_tile.
    best = 128
    for cand in range(128, min(tvp, max_tile) + 1, 128):
        if tvp % cand == 0:
            best = cand
    return best


# ----------------------------------------------------------------------------
# Wrapper
# ----------------------------------------------------------------------------
def student_forward(x, params, *, max_row_tile=1024, mxu_dtype=jnp.bfloat16,
                    feature_layout="nctvm"):
    """x: (N, I, C, T, V, M) float32 -> (out (N,K), feature).

    feature_layout:
      "nctvm" (default): PyTorch layout (N, Cm, T, V, M) — matches Student.forward.
      "nmctv": kernel-native (N, M, Cm, T, V) — skips the extra HBM transpose
               pass; use when the consumer can accept this layout.
    """
    w_in, b_in, w_main3, b_main, wc, bc = params
    N, I, C, T, V, M = x.shape
    H = w_in.shape[-1]
    Cm = w_main3.shape[-1]
    K = wc.shape[-1]
    NM, TV = N * M, T * V
    TVp = ((TV + 127) // 128) * 128          # pad rows up to a lane multiple

    # Cast to bf16 BEFORE the layout transpose -> the XLA copy moves half the bytes.
    x_b = x.astype(mxu_dtype)
    # (N,I,C,T,V,M) -> (I,C,N,M,T*V), zero-pad rows, flatten to (I*C, N*M*TVp).
    x_t = jnp.transpose(x_b, (1, 2, 0, 5, 3, 4)).reshape(I, C, N, M, TV)
    if TVp != TV:
        x_t = jnp.pad(x_t, ((0, 0),) * 4 + ((0, TVp - TV),))
    x_cat = x_t.reshape(I * C, NM * TVp)

    # Pack weights into the transposed / block-diagonal MXU layout (tiny).
    wbd = jnp.zeros((I * H, I * C), jnp.float32)
    for i in range(I):                                       # static, I is small
        wbd = wbd.at[i * H:(i + 1) * H, i * C:(i + 1) * C].set(w_in[i].T)
    wbd = wbd.astype(mxu_dtype)
    bin_col = b_in.reshape(I * H, 1).astype(jnp.float32)
    wm_t = w_main3.reshape(I * H, Cm).T.astype(mxu_dtype)    # (Cm, I*H)
    bm_col = b_main.reshape(Cm, 1).astype(jnp.float32)

    row_tile = _pick_row_tile(TVp, max_row_tile)
    inner = TVp // row_tile

    kernel = functools.partial(stream_pool_kernel, tv_valid=TV, tv_padded=TVp)
    # NOTE: the psum accumulator relies on (NM outer "parallel", rows inner
    # "arbitrary") grid order — do not reorder / reparallelize the inner axis.
    y_t, psum = pl.pallas_call(
        kernel,
        out_shape=(
            jax.ShapeDtypeStruct((NM, Cm, TVp), jnp.bfloat16),   # features (bf16)
            jax.ShapeDtypeStruct((NM, 1, Cm), jnp.float32),      # per-(n,m) T*V sums
        ),
        grid_spec=pltpu.PrefetchScalarGridSpec(
            num_scalar_prefetch=0,
            grid=(NM, inner),
            in_specs=[
                pl.BlockSpec((I * C, row_tile),
                             lambda nm, rt: (0, nm * inner + rt)),
                pl.BlockSpec((I * H, I * C), lambda nm, rt: (0, 0)),
                pl.BlockSpec((I * H, 1), lambda nm, rt: (0, 0)),
                pl.BlockSpec((Cm, I * H), lambda nm, rt: (0, 0)),
                pl.BlockSpec((Cm, 1), lambda nm, rt: (0, 0)),
            ],
            out_specs=[
                pl.BlockSpec((1, Cm, row_tile), lambda nm, rt: (nm, 0, rt)),
                pl.BlockSpec((1, 1, Cm), lambda nm, rt: (nm, 0, 0)),
            ],
            scratch_shapes=[pltpu.VMEM((Cm, row_tile), jnp.float32)],
        ),
        compiler_params=pltpu.CompilerParams(
            dimension_semantics=("parallel", "arbitrary"),
            vmem_limit_bytes=32 * 1024 * 1024,
        ),
    )(x_cat, wbd, bin_col, wm_t, bm_col)

    y_native = y_t[:, :, :TV].reshape(N, M, Cm, T, V)        # drop row padding
    if feature_layout == "nmctv":
        feature = y_native                                   # no extra HBM pass
    else:
        # PyTorch layout (N,Cm,T,V,M); transpose now runs on bf16 (half traffic).
        feature = jnp.transpose(y_native, (0, 2, 3, 4, 1))

    # classifier on pooled features (args.old_sp == False path)
    inv_count = 1.0 / float(M * TV)
    out = pl.pallas_call(
        functools.partial(classifier_kernel, inv_count=inv_count),
        out_shape=jax.ShapeDtypeStruct((N, K), jnp.float32),
        grid_spec=pltpu.PrefetchScalarGridSpec(
            num_scalar_prefetch=0,
            grid=(1,),
            in_specs=[
                pl.BlockSpec((N, M, Cm), lambda i: (0, 0, 0)),
                pl.BlockSpec((Cm, K), lambda i: (0, 0)),
                pl.BlockSpec((1, K), lambda i: (0, 0)),
            ],
            out_specs=pl.BlockSpec((N, K), lambda i: (0, 0)),
        ),
    )(psum.reshape(N, M, Cm), wc, bc)

    return out, feature


# ----------------------------------------------------------------------------
# Pure-JAX reference (same bf16 matmul casts) for a self-check.
# ----------------------------------------------------------------------------
def reference_forward(x, params, mxu_dtype=jnp.bfloat16):
    w_in, b_in, w_main3, b_main, wc, bc = params
    N, I, C, T, V, M = x.shape
    H = w_in.shape[-1]
    Cm = w_main3.shape[-1]
    xr = jnp.transpose(x, (1, 0, 5, 3, 4, 2)).reshape(I, N * M * T * V, C)
    hs = []
    for i in range(I):
        hi = jnp.dot(xr[i].astype(mxu_dtype), w_in[i].astype(mxu_dtype),
                     preferred_element_type=jnp.float32)
        hs.append(jnp.maximum(hi + b_in[i], 0.0))
    hcat = jnp.concatenate(hs, axis=-1)                        # (R, I*H)
    y = jnp.dot(hcat.astype(mxu_dtype),
                w_main3.reshape(I * H, Cm).astype(mxu_dtype),
                preferred_element_type=jnp.float32)
    y = jnp.maximum(y + b_main, 0.0)                           # (R, Cm)
    feature = jnp.transpose(y.reshape(N, M, T, V, Cm), (0, 4, 2, 3, 1))
    pooled = y.reshape(N, M, T * V, Cm).mean(axis=2).mean(axis=1)
    out = jnp.dot(pooled, wc) + bc
    return out, feature


# ----------------------------------------------------------------------------
# Deterministic parameter init (mirrors Student.__init_param; bias_scale != 0
# is used only by the self-check to exercise bias / row-masking paths).
# ----------------------------------------------------------------------------
def init_params(key, I, C, H, Cm, K, bias_scale=0.0):
    k1, k2, k3, k4, k5 = jax.random.split(key, 5)
    # Conv2d 1x1: kaiming_normal_(mode='fan_out', nonlinearity='leaky_relu')
    a = 0.01
    gain = math.sqrt(2.0 / (1.0 + a * a))
    std_in = gain / math.sqrt(H)        # fan_out = H * 1 * 1
    std_main = gain / math.sqrt(Cm)     # fan_out = Cm * 1 * 1
    w_in = (jax.random.normal(k1, (I, C, H)) * std_in).astype(jnp.float32)
    b_in = (jax.random.normal(k4, (I, H)) * bias_scale).astype(jnp.float32)
    w_main3 = (jax.random.normal(k2, (I * H, Cm)) * std_main).astype(
        jnp.float32
    ).reshape(I, H, Cm)                 # main conv weights split per branch
    b_main = (jax.random.normal(k5, (1, Cm)) * bias_scale).astype(jnp.float32)
    # Linear classifier: normal(std=0.001), bias 0
    wc = (jax.random.normal(k3, (Cm, K)) * 0.001).astype(jnp.float32)
    bc = jnp.zeros((1, K), jnp.float32)
    return w_in, b_in, w_main3, b_main, wc, bc


if __name__ == "__main__":
    def run_and_check(N, I, C, T, V, M, H, Cm, K, seed,
                      max_row_tile=1024, bias_scale=0.0):
        params = init_params(jax.random.PRNGKey(seed + 1), I, C, H, Cm, K,
                             bias_scale=bias_scale)
        x = jax.random.normal(jax.random.PRNGKey(seed),
                              (N, I, C, T, V, M), dtype=jnp.float32)
        out, feature = student_forward(x, params, max_row_tile=max_row_tile)
        jax.block_until_ready((out, feature))
        assert out.shape == (N, K), out.shape
        assert feature.shape == (N, Cm, T, V, M), feature.shape
        out_ref, feature_ref = reference_forward(x, params)
        np.testing.assert_allclose(
            np.asarray(feature.astype(jnp.float32)), np.asarray(feature_ref),
            rtol=2e-2, atol=2e-3)         # feature is stored in bf16
        np.testing.assert_allclose(np.asarray(out), np.asarray(out_ref),
                                   rtol=1e-2, atol=1e-4)

    # main small config: N=2 clips, I=2 input streams, C=4 channels,
    # T=16 frames, V=8 joints, M=2 persons  (T*V = 128, no padding)
    run_and_check(N=2, I=2, C=4, T=16, V=8, M=2, H=16, Cm=32, K=10, seed=0)

    # padded / multi-row-tile config (V=25 joints -> T*V = 200, padded to 256,
    # row_tile forced to 128 so the tail-mask + epilogue reduce are exercised)
    run_and_check(N=1, I=2, C=4, T=8, V=25, M=2, H=16, Cm=32, K=10, seed=3,
                  max_row_tile=128, bias_scale=0.05)

    print("KERNEL_OK")
</pallas_src>

<mosaic_0001>
module attributes {stable_mosaic.version = 11 : i64} {
  func.func @stream_pool_kernel(%arg0: i32, %arg1: i32, %arg2: memref<8x128xbf16, #tpu.memory_space<vmem>>, %arg3: memref<32x8xbf16, #tpu.memory_space<vmem>>, %arg4: memref<32x1xf32, #tpu.memory_space<vmem>>, %arg5: memref<32x32xbf16, #tpu.memory_space<vmem>>, %arg6: memref<32x1xf32, #tpu.memory_space<vmem>>, %arg7: memref<1x32x128xbf16, #tpu.memory_space<vmem>>, %arg8: memref<1x1x32xf32, #tpu.memory_space<vmem>>, %arg9: memref<32x128xf32, #tpu.memory_space<vmem>>) attributes {dimension_semantics = [#tpu.dimension_semantics<parallel>, #tpu.dimension_semantics<arbitrary>], iteration_bounds = array<i64: 4, 1>, scalar_prefetch = 0 : i64, scratch_operands = 1 : i64, tpu.core_type = #tpu.core_type<tc>, window_params = [{transform_indices = @transform_0, window_bounds = array<i64: 8, 128>}, {pipeline_mode = #tpu.pipeline_mode<synchronous>, transform_indices = @transform_1, window_bounds = array<i64: 32, 8>}, {pipeline_mode = #tpu.pipeline_mode<synchronous>, transform_indices = @transform_2, window_bounds = array<i64: 32, 1>}, {pipeline_mode = #tpu.pipeline_mode<synchronous>, transform_indices = @transform_3, window_bounds = array<i64: 32, 32>}, {pipeline_mode = #tpu.pipeline_mode<synchronous>, transform_indices = @transform_4, window_bounds = array<i64: 32, 1>}, {transform_indices = @transform_5, window_bounds = array<i64: 1, 32, 128>}, {transform_indices = @transform_6, window_bounds = array<i64: 1, 1, 32>}]} {
    %c0 = arith.constant 0 : index
    %c0_0 = arith.constant 0 : index
    %0 = vector.load %arg3[%c0, %c0_0] : memref<32x8xbf16, #tpu.memory_space<vmem>>, vector<32x8xbf16>
    %c0_1 = arith.constant 0 : index
    %c0_2 = arith.constant 0 : index
    %1 = vector.load %arg2[%c0_1, %c0_2] : memref<8x128xbf16, #tpu.memory_space<vmem>>, vector<8x128xbf16>
    %cst = arith.constant dense<0.000000e+00> : vector<32x128xf32>
    %2 = tpu.matmul %0, %1, %cst {dimension_numbers = #tpu.dot_dimension_numbers<[1], [0], [0], [1], [0, 0, 1, 1], [], []>} : vector<32x8xbf16>, vector<8x128xbf16>, vector<32x128xf32> -> vector<32x128xf32>
    %c0_3 = arith.constant 0 : index
    %c0_4 = arith.constant 0 : index
    %3 = vector.load %arg4[%c0_3, %c0_4] : memref<32x1xf32, #tpu.memory_space<vmem>>, vector<32x1xf32>
    %4 = vector.broadcast %3 : vector<32x1xf32> to vector<32x128xf32>
    %5 = arith.addf %2, %4 : vector<32x128xf32>
    %cst_5 = arith.constant 0.000000e+00 : f32
    %6 = vector.broadcast %cst_5 : f32 to vector<32x128xf32>
    %7 = arith.maximumf %5, %6 : vector<32x128xf32>
    %c0_6 = arith.constant 0 : index
    %c0_7 = arith.constant 0 : index
    %8 = vector.load %arg5[%c0_6, %c0_7] : memref<32x32xbf16, #tpu.memory_space<vmem>>, vector<32x32xbf16>
    %9 = arith.truncf %7 : vector<32x128xf32> to vector<32x128xbf16>
    %cst_8 = arith.constant dense<0.000000e+00> : vector<32x128xf32>
    %10 = tpu.matmul %8, %9, %cst_8 {dimension_numbers = #tpu.dot_dimension_numbers<[1], [0], [0], [1], [0, 0, 1, 1], [], []>} : vector<32x32xbf16>, vector<32x128xbf16>, vector<32x128xf32> -> vector<32x128xf32>
    %c0_9 = arith.constant 0 : index
    %c0_10 = arith.constant 0 : index
    %11 = vector.load %arg6[%c0_9, %c0_10] : memref<32x1xf32, #tpu.memory_space<vmem>>, vector<32x1xf32>
    %12 = vector.broadcast %11 : vector<32x1xf32> to vector<32x128xf32>
    %13 = arith.addf %10, %12 : vector<32x128xf32>
    %cst_11 = arith.constant 0.000000e+00 : f32
    %14 = vector.broadcast %cst_11 : f32 to vector<32x128xf32>
    %15 = arith.maximumf %13, %14 : vector<32x128xf32>
    %16 = arith.truncf %15 : vector<32x128xf32> to vector<32x128xbf16>
    %c0_12 = arith.constant 0 : index
    %c0_13 = arith.constant 0 : index
    %c0_14 = arith.constant 0 : index
    %17 = vector.load %arg7[%c0_12, %c0_13, %c0_14] : memref<1x32x128xbf16, #tpu.memory_space<vmem>>, vector<1x32x128xbf16>
    %18 = vector.shape_cast %17 : vector<1x32x128xbf16> to vector<32x128xbf16>
    %19 = vector.shape_cast %16 : vector<32x128xbf16> to vector<1x32x128xbf16>
    tpu.vector_store %arg7[%c0_12, %c0_13, %c0_14], %19 {strides = array<i32>} : memref<1x32x128xbf16, #tpu.memory_space<vmem>>, vector<1x32x128xbf16>,
    %c0_i32 = arith.constant 0 : i32
    %20 = arith.cmpi eq, %arg1, %c0_i32 : i32
    %21 = arith.extui %20 : i1 to i32
    %c0_i32_15 = arith.constant 0 : i32
    %22 = arith.cmpi ne, %21, %c0_i32_15 : i32
    scf.if %22 {
      %cst_22 = arith.constant 0.000000e+00 : f32
      %29 = vector.broadcast %cst_22 : f32 to vector<32x128xf32>
      %c0_23 = arith.constant 0 : index
      %c0_24 = arith.constant 0 : index
      %30 = vector.load %arg9[%c0_23, %c0_24] : memref<32x128xf32, #tpu.memory_space<vmem>>, vector<32x128xf32>
      tpu.vector_store %arg9[%c0_23, %c0_24], %29 {strides = array<i32>} : memref<32x128xf32, #tpu.memory_space<vmem>>, vector<32x128xf32>,
    } else {
    }
    %c0_16 = arith.constant 0 : index
    %c0_17 = arith.constant 0 : index
    %23 = vector.load %arg9[%c0_16, %c0_17] : memref<32x128xf32, #tpu.memory_space<vmem>>, vector<32x128xf32>
    %24 = arith.addf %23, %15 : vector<32x128xf32>
    %c0_18 = arith.constant 0 : index
    %c0_19 = arith.constant 0 : index
    %25 = vector.load %arg9[%c0_18, %c0_19] : memref<32x128xf32, #tpu.memory_space<vmem>>, vector<32x128xf32>
    tpu.vector_store %arg9[%c0_18, %c0_19], %24 {strides = array<i32>} : memref<32x128xf32, #tpu.memory_space<vmem>>, vector<32x128xf32>,
    %c0_i32_20 = arith.constant 0 : i32
    %26 = arith.cmpi eq, %arg1, %c0_i32_20 : i32
    %27 = arith.extui %26 : i1 to i32
    %c0_i32_21 = arith.constant 0 : i32
    %28 = arith.cmpi ne, %27, %c0_i32_21 : i32
    scf.if %28 {
      %c0_22 = arith.constant 0 : index
      %c0_23 = arith.constant 0 : index
      %29 = vector.load %arg9[%c0_22, %c0_23] : memref<32x128xf32, #tpu.memory_space<vmem>>, vector<32x128xf32>
      %cst_24 = arith.constant dense<0.000000e+00> : vector<32xf32>
      %30 = vector.multi_reduction <add>, %29, %cst_24 [1] : vector<32x128xf32> to vector<32xf32>
      %31 = vector.shape_cast %30 : vector<32xf32> to vector<1x1x32xf32>
      %c0_25 = arith.constant 0 : index
      %c0_26 = arith.constant 0 : index
      %c0_27 = arith.constant 0 : index
      %32 = vector.load %arg8[%c0_25, %c0_26, %c0_27] : memref<1x1x32xf32, #tpu.memory_space<vmem>>, vector<1x1x32xf32>
      tpu.vector_store %arg8[%c0_25, %c0_26, %c0_27], %31 {strides = array<i32>} : memref<1x1x32xf32, #tpu.memory_space<vmem>>, vector<1x1x32xf32>,
    } else {
    }
    return
  }
  func.func @transform_0(%arg0: i32, %arg1: i32) -> (i32, i32) {
    %c1_i32 = arith.constant 1 : i32
    %0 = arith.muli %arg0, %c1_i32 : i32
    %1 = arith.addi %0, %arg1 : i32
    %c0_i32 = arith.constant 0 : i32
    %c0_i32_0 = arith.constant 0 : i32
    return %c0_i32, %1 : i32, i32
  }
  func.func @transform_1(%arg0: i32, %arg1: i32) -> (i32, i32) {
    %c0_i32 = arith.constant 0 : i32
    %c0_i32_0 = arith.constant 0 : i32
    %c0_i32_1 = arith.constant 0 : i32
    return %c0_i32, %c0_i32_0 : i32, i32
  }
  func.func @transform_2(%arg0: i32, %arg1: i32) -> (i32, i32) {
    %c0_i32 = arith.constant 0 : i32
    %c0_i32_0 = arith.constant 0 : i32
    %c0_i32_1 = arith.constant 0 : i32
    return %c0_i32, %c0_i32_0 : i32, i32
  }
  func.func @transform_3(%arg0: i32, %arg1: i32) -> (i32, i32) {
    %c0_i32 = arith.constant 0 : i32
    %c0_i32_0 = arith.constant 0 : i32
    %c0_i32_1 = arith.constant 0 : i32
    return %c0_i32, %c0_i32_0 : i32, i32
  }
  func.func @transform_4(%arg0: i32, %arg1: i32) -> (i32, i32) {
    %c0_i32 = arith.constant 0 : i32
    %c0_i32_0 = arith.constant 0 : i32
    %c0_i32_1 = arith.constant 0 : i32
    return %c0_i32, %c0_i32_0 : i32, i32
  }
  func.func @transform_5(%arg0: i32, %arg1: i32) -> (i32, i32, i32) {
    %c0_i32 = arith.constant 0 : i32
    %c0_i32_0 = arith.constant 0 : i32
    return %arg0, %c0_i32, %arg1 : i32, i32, i32
  }
  func.func @transform_6(%arg0: i32, %arg1: i32) -> (i32, i32, i32) {
    %c0_i32 = arith.constant 0 : i32
    %c0_i32_0 = arith.constant 0 : i32
    %c0_i32_1 = arith.constant 0 : i32
    return %arg0, %c0_i32, %c0_i32_0 : i32, i32, i32
  }
}

</mosaic_0001>

<llo_original>
// kernel: tpu_custom_call.1
$region0: #{tpu_custom_call.1}
  #allocation0 [shape = 'u32[]', space=smem, size = 0x4, offset = 0x4, fixed_abs, tag = 'smem constant byte address 0x4 - core index']
  #allocation1 [shape = 'u32[72,128]{1,0:T(1,128)}', space=vmem, size = 0x9000, scoped, tag = 'internal scratch']
  #allocation2 [shape = 'f32[32,128]{1,0:T(8,128)}', space=vmem, size = 0x4000, scoped, tag = 'scratch operand']
  %s0 = inlined_call_operand.vmem [shape: bf16[8,512], index: 0, kind: input, shape index: {}]
  %s1 = inlined_call_operand.vmem [shape: bf16[32,8], index: 1, kind: input, shape index: {}]
  %s2 = inlined_call_operand.vmem [shape: f32[32,1], index: 2, kind: input, shape index: {}]
  %s3 = inlined_call_operand.vmem [shape: bf16[32,32], index: 3, kind: input, shape index: {}]
  %s4 = inlined_call_operand.vmem [shape: f32[32,1], index: 4, kind: input, shape index: {}]
  %s5 = inlined_call_operand.hbm [shape: bf16[4,32,128], index: 5, kind: output, shape index: {0}]
  %s6 = inlined_call_operand.hbm [shape: f32[4,1,32], index: 6, kind: output, shape index: {1}]
  %7 = xla_tuple %s5, %s6
  %s8 = sld [smem:[#allocation0]]
  $region69: #{tpu_custom_call.1} parent=0
    _
  %s10 = ssub.s32 1, %s8
  %s11 = scalar_select 0, %s10, %s8
  $region1: #{tpu_custom_call.1} parent=0
    #allocation3 [shape = 'u8[16384]{0}', space=vmem, size = 0x4000, scoped, tag = 'output window, operand 0']
    #allocation4 [shape = 's32[2]{0}', space=sflag, size = 0x8, scoped, tag = 'scoped memory for tpu_custom_call.1']
    #allocation5 [shape = 'u8[1024]{0}', space=vmem, size = 0x400, scoped, tag = 'output window, operand 1']
    #allocation6 [shape = 's32[2]{0}', space=sflag, size = 0x8, scoped, tag = 'scoped memory for tpu_custom_call.1']
    %12 = vsyncpa [#allocation4], 0
    %s13 = scalar_lea.sflag [#allocation4], 1
    %14 = vsyncpa %s13, 0
    %15 = vsyncpa [#allocation6], 0
    %s16 = scalar_lea.sflag [#allocation6], 1
    %17 = vsyncpa %s16, 0
    loop: start=0, step=1, limit=6
    $region2: #{tpu_custom_call.1} parent=1 // loop_pre_header
      _
    $region3: #{tpu_custom_call.1} parent=1 // loop_header
      %s19 = sphi 0, %s23
      %p20 = scmp.ge.s32.totalorder %s19, 6
      %s26 = sphi 0, %s38
      %s27 = sphi 0, %s34
      %s28 = sphi 0, %s26
      %s29 = sphi 0, %s27
      %s30 = sphi 0, %s28
      %s31 = sphi 0, %s29
      %s43 = sphi 0, %s45
      %s46 = sphi 0, %s43
      %s47 = sphi 0, %s46
      %s63 = sphi 0, %s47
      %s67 = sphi 0, %s67
      %s69 = sphi 0, %s67
      %s70 = sphi 0, %s69
      %s84 = sphi 0, %s70
      %s88 = sphi 0, %s88
      %s90 = sphi 0, %s88
      %s91 = sphi 0, %s90
      %s105 = sphi 0, %s91
      %s109 = sphi 0, %s109
      %s111 = sphi 0, %s109
      %s112 = sphi 0, %s111
      %s126 = sphi 0, %s112
      %s130 = sphi 0, %s130
      %s132 = sphi 0, %s130
      %s133 = sphi 0, %s132
      %s147 = sphi 0, %s133
      %s155 = sphi 0, %s157
      %s158 = sphi 0, %s155
      %s159 = sphi 0, %s158
      %s175 = sphi 0, %s159
      %s181 = sphi 0, %s183
      %s184 = sphi 0, %s181
      %s185 = sphi 0, %s184
      %s201 = sphi 0, %s185
    $region4: #{tpu_custom_call.1} parent=1 // loop_header_branch
      %22 = sbr.rel (%p20) target = $region8
    $region5: #{tpu_custom_call.1} parent=1 // loop_body
      %s24 = ssub.s32 %s19, 1
      %s25 = ssub.s32 %s19, 2
      %s32 = sadd.s32 1, %s27
      %p33 = scmp.ge.s32.totalorder %s32, 1
      %s34 = scalar_select %p33, 0, %s32
      %s35 = sadd.s32 1, %s26
      %s36 = scalar_select %p33, %s35, %s26
      %p37 = scmp.ge.s32.totalorder %s36, 4
      %s38 = scalar_select %p37, 0, %s36
      %s39 = sadd.s32 %s26, %s27
      %s40 = sadd.s32 %s38, %s34
      %s41 = ssub.s32 %s39, %s40
      %p42 = scmp.eq.s32.totalorder %s41, 0
      %s44 = sadd.s32 %s43, 1
      %s45 = scalar_select %p42, %s43, %s44
      %p48 = pneg %p42
      %p49 = scmp.eq.s32.totalorder %s19, 3
      %p50 = por %p48, %p49
      %p51 = scmp.ne.s32.totalorder %s43, %s46
      %p52 = scmp.eq.s32.totalorder %s19, 0
      %p53 = por %p51, %p52
      %p54 = scmp.ne.s32.totalorder %s43, %s46
      %p55 = scmp.eq.s32.totalorder %s24, 3
      %p56 = por %p54, %p55
      %p57 = scmp.ne.s32.totalorder %s46, %s47
      %p58 = scmp.eq.s32.totalorder %s24, 0
      %p59 = por %p57, %p58
      %p60 = scmp.ne.s32.totalorder %s46, %s47
      %p61 = scmp.eq.s32.totalorder %s25, 3
      %p62 = por %p60, %p61
      %p64 = scmp.ne.s32.totalorder %s47, %s63
      %p65 = scmp.eq.s32.totalorder %s25, 0
      %p66 = por %p64, %p65
      %s68 = sadd.s32 %s67, 1
      %p71 = scmp.eq.s32.totalorder %s19, 3
      %p72 = scmp.ne.s32.totalorder %s67, %s69
      %p73 = scmp.eq.s32.totalorder %s19, 0
      %p74 = por %p72, %p73
      %p75 = scmp.ne.s32.totalorder %s67, %s69
      %p76 = scmp.eq.s32.totalorder %s24, 3
      %p77 = por %p75, %p76
      %p78 = scmp.ne.s32.totalorder %s69, %s70
      %p79 = scmp.eq.s32.totalorder %s24, 0
      %p80 = por %p78, %p79
      %p81 = scmp.ne.s32.totalorder %s69, %s70
      %p82 = scmp.eq.s32.totalorder %s25, 3
      %p83 = por %p81, %p82
      %p85 = scmp.ne.s32.totalorder %s70, %s84
      %p86 = scmp.eq.s32.totalorder %s25, 0
      %p87 = por %p85, %p86
      %s89 = sadd.s32 %s88, 1
      %p92 = scmp.eq.s32.totalorder %s19, 3
      %p93 = scmp.ne.s32.totalorder %s88, %s90
      %p94 = scmp.eq.s32.totalorder %s19, 0
      %p95 = por %p93, %p94
      %p96 = scmp.ne.s32.totalorder %s88, %s90
      %p97 = scmp.eq.s32.totalorder %s24, 3
      %p98 = por %p96, %p97
      %p99 = scmp.ne.s32.totalorder %s90, %s91
      %p100 = scmp.eq.s32.totalorder %s24, 0
      %p101 = por %p99, %p100
      %p102 = scmp.ne.s32.totalorder %s90, %s91
      %p103 = scmp.eq.s32.totalorder %s25, 3
      %p104 = por %p102, %p103
      %p106 = scmp.ne.s32.totalorder %s91, %s105
      %p107 = scmp.eq.s32.totalorder %s25, 0
      %p108 = por %p106, %p107
      %s110 = sadd.s32 %s109, 1
      %p113 = scmp.eq.s32.totalorder %s19, 3
      %p114 = scmp.ne.s32.totalorder %s109, %s111
      %p115 = scmp.eq.s32.totalorder %s19, 0
      %p116 = por %p114, %p115
      %p117 = scmp.ne.s32.totalorder %s109, %s111
      %p118 = scmp.eq.s32.totalorder %s24, 3
      %p119 = por %p117, %p118
      %p120 = scmp.ne.s32.totalorder %s111, %s112
      %p121 = scmp.eq.s32.totalorder %s24, 0
      %p122 = por %p120, %p121
      %p123 = scmp.ne.s32.totalorder %s111, %s112
      %p124 = scmp.eq.s32.totalorder %s25, 3
      %p125 = por %p123, %p124
      %p127 = scmp.ne.s32.totalorder %s112, %s126
      %p128 = scmp.eq.s32.totalorder %s25, 0
      %p129 = por %p127, %p128
      %s131 = sadd.s32 %s130, 1
      %p134 = scmp.eq.s32.totalorder %s19, 3
      %p135 = scmp.ne.s32.totalorder %s130, %s132
      %p136 = scmp.eq.s32.totalorder %s19, 0
      %p137 = por %p135, %p136
      %p138 = scmp.ne.s32.totalorder %s130, %s132
      %p139 = scmp.eq.s32.totalorder %s24, 3
      %p140 = por %p138, %p139
      %p141 = scmp.ne.s32.totalorder %s132, %s133
      %p142 = scmp.eq.s32.totalorder %s24, 0
      %p143 = por %p141, %p142
      %p144 = scmp.ne.s32.totalorder %s132, %s133
      %p145 = scmp.eq.s32.totalorder %s25, 3
      %p146 = por %p144, %p145
      %p148 = scmp.ne.s32.totalorder %s133, %s147
      %p149 = scmp.eq.s32.totalorder %s25, 0
      %p150 = por %p148, %p149
      %s151 = ssub.s32 %s26, %s38
      %s152 = ssub.s32 %s27, %s34
      %s153 = sor.u32 %s151, %s152
      %p154 = scmp.eq.s32.totalorder %s153, 0
      %s156 = sadd.s32 %s155, 1
      %s157 = scalar_select %p154, %s155, %s156
      %p160 = pneg %p154
      %p161 = scmp.eq.s32.totalorder %s19, 3
      %p162 = por %p160, %p161
      %p163 = scmp.ne.s32.totalorder %s155, %s158
      %p164 = scmp.eq.s32.totalorder %s19, 0
      %p165 = por %p163, %p164
      %p166 = scmp.ne.s32.totalorder %s155, %s158
      %p167 = scmp.eq.s32.totalorder %s24, 3
      %p168 = por %p166, %p167
      %p169 = scmp.ne.s32.totalorder %s158, %s159
      %p170 = scmp.eq.s32.totalorder %s24, 0
      %p171 = por %p169, %p170
      %p172 = scmp.ne.s32.totalorder %s158, %s159
      %p173 = scmp.eq.s32.totalorder %s25, 3
      %p174 = por %p172, %p173
      %p176 = scmp.ne.s32.totalorder %s159, %s175
      %p177 = scmp.eq.s32.totalorder %s25, 0
      %p178 = por %p176, %p177
      %s179 = ssub.s32 %s26, %s38
      %p180 = scmp.eq.s32.totalorder %s179, 0
      %s182 = sadd.s32 %s181, 1
      %s183 = scalar_select %p180, %s181, %s182
      %p186 = pneg %p180
      %p187 = scmp.eq.s32.totalorder %s19, 3
      %p188 = por %p186, %p187
      %p189 = scmp.ne.s32.totalorder %s181, %s184
      %p190 = scmp.eq.s32.totalorder %s19, 0
      %p191 = por %p189, %p190
      %p192 = scmp.ne.s32.totalorder %s181, %s184
      %p193 = scmp.eq.s32.totalorder %s24, 3
      %p194 = por %p192, %p193
      %p195 = scmp.ne.s32.totalorder %s184, %s185
      %p196 = scmp.eq.s32.totalorder %s24, 0
      %p197 = por %p195, %p196
      %p198 = scmp.ne.s32.totalorder %s184, %s185
      %p199 = scmp.eq.s32.totalorder %s25, 3
      %p200 = por %p198, %p199
      %p202 = scmp.ne.s32.totalorder %s185, %s201
      %p203 = scmp.eq.s32.totalorder %s25, 0
      %p204 = por %p202, %p203
      %p205 = scmp.le.s32.totalorder 1, %s19
      %p206 = scmp.lt.s32.totalorder %s19, 5
      %p207 = pnand %p205, %p206
      %p208 = pneg %p207
      // Predicated region
      $region9: #{tpu_custom_call.1} parent=5 // pred_check
        _
      $region10: #{tpu_custom_call.1} parent=5 // pred_check_branch
        %210 = sbr.rel (%p207) target = $region12
      $region11: #{tpu_custom_call.1} parent=5 // pred_region
        %s211 = ssub.s32 %s19, 1
        // Predicated region
        $region13: #{tpu_custom_call.1} parent=11 // pred_check
          %p212 = pneg %p80
        $region14: #{tpu_custom_call.1} parent=11 // pred_check_branch
          %214 = sbr.rel (%p212) target = $region16
        $region15: #{tpu_custom_call.1} parent=11 // pred_region
          _
        $region16: #{tpu_custom_call.1} parent=11 // pred_fallthru
          _
        // Predicated region
        $region17: #{tpu_custom_call.1} parent=11 // pred_check
          %p215 = pneg %p101
        $region18: #{tpu_custom_call.1} parent=11 // pred_check_branch
          %217 = sbr.rel (%p215) target = $region20
        $region19: #{tpu_custom_call.1} parent=11 // pred_region
          _
        $region20: #{tpu_custom_call.1} parent=11 // pred_fallthru
          _
        // Predicated region
        $region21: #{tpu_custom_call.1} parent=11 // pred_check
          %p218 = pneg %p122
        $region22: #{tpu_custom_call.1} parent=11 // pred_check_branch
          %220 = sbr.rel (%p218) target = $region24
        $region23: #{tpu_custom_call.1} parent=11 // pred_region
          _
        $region24: #{tpu_custom_call.1} parent=11 // pred_fallthru
          _
        // Predicated region
        $region25: #{tpu_custom_call.1} parent=11 // pred_check
          %p221 = pneg %p143
        $region26: #{tpu_custom_call.1} parent=11 // pred_check_branch
          %223 = sbr.rel (%p221) target = $region28
        $region27: #{tpu_custom_call.1} parent=11 // pred_region
          _
        $region28: #{tpu_custom_call.1} parent=11 // pred_fallthru
          _
      $region12: #{tpu_custom_call.1} parent=5 // pred_fallthru
        _
      %p224 = scmp.lt.s32.totalorder %s19, 4
      // Predicated region
      $region29: #{tpu_custom_call.1} parent=5 // pred_check
        %p225 = pneg %p224
      $region30: #{tpu_custom_call.1} parent=5 // pred_check_branch
        %227 = sbr.rel (%p225) target = $region32
      $region31: #{tpu_custom_call.1} parent=5 // pred_region
        // Predicated region
        $region33: #{tpu_custom_call.1} parent=31 // pred_check
          %p228 = pneg %p53
        $region34: #{tpu_custom_call.1} parent=31 // pred_check_branch
          %230 = sbr.rel (%p228) target = $region36
        $region35: #{tpu_custom_call.1} parent=31 // pred_region
          %s231 = sadd.s32 %s26, %s27
          %p232 = scmp.lt.s32.totalorder %s231, 3
          %s233 = scalar_select %p232, %s231, 3
          %s234 = smul.addr %s233, 4
          %s235 = scalar_lea.vmem %s0, %s234
          %s236 = sadd.s32 %s26, %s27
        $region36: #{tpu_custom_call.1} parent=31 // pred_fallthru
          _
      $region32: #{tpu_custom_call.1} parent=5 // pred_fallthru
        _
      %p237 = scmp.le.s32.totalorder 1, %s19
      %p238 = scmp.lt.s32.totalorder %s19, 5
      %p239 = pnand %p237, %p238
      %p240 = pneg %p239
      // Predicated region
      $region37: #{tpu_custom_call.1} parent=5 // pred_check
        _
      $region38: #{tpu_custom_call.1} parent=5 // pred_check_branch
        %242 = sbr.rel (%p239) target = $region40
      $region39: #{tpu_custom_call.1} parent=5 // pred_region
        %s243 = ssub.s32 %s19, 1
        %s244 = sadd.s32 %s28, %s29
        %p245 = scmp.lt.s32.totalorder %s244, 3
        %s246 = scalar_select %p245, %s244, 3
        %s247 = smul.addr %s246, 4
        %s248 = scalar_lea.vmem %s0, %s247
        %p249 = pneg %p59
        %p250 = pneg %p56
        %p251 = pneg %p80
        %p252 = pneg %p77
        %p253 = pneg %p101
        %p254 = pneg %p98
        %p255 = pneg %p122
        %p256 = pneg %p119
        %p257 = pneg %p143
        %p258 = pneg %p140
        %p259 = pneg %p171
        %p260 = pneg %p168
        %s261 = sand.u32 %s158, 1
        %s262 = scalar_lea.sflag [#allocation4], %s261
        %s263 = sand.u32 %s158, 1
        %s264 = smul.addr %s263, 16
        %s265 = scalar_lea.vmem [#allocation3], %s264
        %p266 = pneg %p197
        %p267 = pneg %p194
        %s268 = sand.u32 %s184, 1
        %s269 = scalar_lea.sflag [#allocation6], %s268
        %s270 = sand.u32 %s184, 1
        %s271 = scalar_lea.vmem [#allocation5], %s270
        %s272 = sadd.s32 %s28, %s29
        %p273 = scmp.lt.s32.totalorder %s272, 3
        %s274 = scalar_select %p273, %s272, 3
        %s275 = smul.addr %s274, 4
        %s276 = scalar_lea.vmem %s0, %s275
        %s277 = sadd.s32 %s28, %s29
        %v279 = vld [vmem:[%s1] sm:$0xf]
        %v280 = vld [vmem:[%s1 + $0x4] sm:$0xf]
        %v281 = vld [vmem:[%s1 + $0x8] sm:$0xf]
        %v282 = vld [vmem:[%s1 + $0xc] sm:$0xf]
        %v283 = vld [vmem:[%s276] sm:$0xf]
        %v284 = vld [vmem:[%s2] sm:$0xff]
        %v285 = vld [vmem:[%s2 + $0x8] sm:$0xff]
        %v286 = vld [vmem:[%s2 + $0x10] sm:$0xff]
        %v287 = vld [vmem:[%s2 + $0x18] sm:$0xff]
        %289 = vset.pattern.permute.xlu0 0
        %290 = vperm.xlu0 %289, %v284
        %v291 = vpop.permute.xlu0 %290
        %294 = vset.pattern.permute.xlu0 0
        %295 = vperm.xlu0 %294, %v285
        %v296 = vpop.permute.xlu0 %295
        %299 = vset.pattern.permute.xlu0 0
        %300 = vperm.xlu0 %299, %v286
        %v301 = vpop.permute.xlu0 %300
        %304 = vset.pattern.permute.xlu0 0
        %305 = vperm.xlu0 %304, %v287
        %v306 = vpop.permute.xlu0 %305
        %v312 = vunpack.c.l.b16 %v279
        %v313 = vunpack.c.l.b16 %v280
        %v314 = vunpack.c.l.b16 %v281
        %v315 = vunpack.c.l.b16 %v282
        %v316 = vpack.c.b16 %v313, %v312
        %v317 = vpack.c.b16 %v315, %v314
        %vm318 = vcmask 64512
        %v320 = vsel %vm318, %v316, 0
        %v323 = vsel %vm318, %v317, 0
        %vm325 = vcmask 1043456
        %v327 = vsel %vm325, %v283, 0
        %329 = vmatpush.bf16.msra.mxu0 0
        %330 = vmatpush.bf16.msra.mxu0 0
        %331 = vmatpush.bf16.msra.mxu0 0
        %332 = vmatpush.bf16.msra.mxu0 0
        %333 = vmatpush.bf16.msra.mxu0 0
        %334 = vmatpush.bf16.msra.mxu0 0
        %335 = vmatpush.bf16.msra.mxu0 0
        %336 = vmatpush.bf16.msra.mxu0 %v327
        %337 = vmatmul.bf16.gmra.mxu0 %v320
        %v338 = vpop.f32.mrf.mxu0
        %v339 = vadd.f32 %v291, %v338
        %v340 = vpop.f32.mrf.mxu0
        %v341 = vadd.f32 %v296, %v340
        %342 = vmatmul.bf16.gmra.mxu0 %v323
        %v343 = vpop.f32.mrf.mxu0
        %v344 = vadd.f32 %v301, %v343
        %v345 = vpop.f32.mrf.mxu0
        %v346 = vadd.f32 %v306, %v345
        %347 = vdwg.mxu0
        %v348 = vmax.f32 %v339, 0.0
        %v349 = vmax.f32 %v341, 0.0
        %v350 = vmax.f32 %v344, 0.0
        %v351 = vmax.f32 %v346, 0.0
        %v352 = vld [vmem:[%s3] sm:$0xf]
        %v353 = vld [vmem:[%s3 + $0x4] sm:$0xf]
        %v354 = vld [vmem:[%s3 + $0x8] sm:$0xf]
        %v355 = vld [vmem:[%s3 + $0xc] sm:$0xf]
        %v356 = vpack.c.bf16 %v349, %v348
        %v357 = vpack.c.bf16 %v351, %v350
        %v358 = vld [vmem:[%s4] sm:$0xff]
        %v359 = vld [vmem:[%s4 + $0x8] sm:$0xff]
        %v360 = vld [vmem:[%s4 + $0x10] sm:$0xff]
        %v361 = vld [vmem:[%s4 + $0x18] sm:$0xff]
        %363 = vset.pattern.permute.xlu0 0
        %364 = vperm.xlu0 %363, %v358
        %v365 = vpop.permute.xlu0 %364
        %368 = vset.pattern.permute.xlu0 0
        %369 = vperm.xlu0 %368, %v359
        %v370 = vpop.permute.xlu0 %369
        %373 = vset.pattern.permute.xlu0 0
        %374 = vperm.xlu0 %373, %v360
        %v375 = vpop.permute.xlu0 %374
        %378 = vset.pattern.permute.xlu0 0
        %379 = vperm.xlu0 %378, %v361
        %v380 = vpop.permute.xlu0 %379
        %v386 = vunpack.c.l.b16 %v352
        %v387 = vunpack.c.l.b16 %v353
        %v388 = vunpack.c.l.b16 %v354
        %v389 = vunpack.c.l.b16 %v355
        %v390 = vpack.c.b16 %v387, %v386
        %v391 = vpack.c.b16 %v389, %v388
        %vm392 = vcmask 261120
        %v394 = vsel %vm392, %v390, 0
        %v397 = vsel %vm392, %v391, 0
        %399 = vmatpush.bf16.msra.mxu0 0
        %400 = vmatpush.bf16.msra.mxu0 0
        %401 = vmatpush.bf16.msra.mxu0 0
        %402 = vmatpush.bf16.msra.mxu0 0
        %403 = vmatpush.bf16.msra.mxu0 0
        %404 = vmatpush.bf16.msra.mxu0 0
        %405 = vmatpush.bf16.msra.mxu0 %v357
        %406 = vmatpush.bf16.msra.mxu0 %v356
        %407 = vmatmul.bf16.gmra.mxu0 %v394
        %v408 = vpop.f32.mrf.mxu0
        %v409 = vadd.f32 %v365, %v408
        %v410 = vpop.f32.mrf.mxu0
        %v411 = vadd.f32 %v370, %v410
        %412 = vmatmul.bf16.gmra.mxu0 %v397
        %v413 = vpop.f32.mrf.mxu0
        %v414 = vadd.f32 %v375, %v413
        %v415 = vpop.f32.mrf.mxu0
        %v416 = vadd.f32 %v380, %v415
        %417 = vdwg.mxu0
        %v418 = vmax.f32 %v409, 0.0
        %v419 = vmax.f32 %v411, 0.0
        %v420 = vmax.f32 %v414, 0.0
        %v421 = vmax.f32 %v416, 0.0
        %v422 = vpack.c.bf16 %v418, %v418
        %v423 = vpack.c.bf16 %v419, %v419
        %v424 = vpack.c.bf16 %v420, %v420
        %v425 = vpack.c.bf16 %v421, %v421
        %426 = vst [vmem:[%s265] sm:$0xf] %v422
        %427 = vst [vmem:[%s265 + $0x4] sm:$0xf] %v423
        %428 = vst [vmem:[%s265 + $0x8] sm:$0xf] %v424
        %429 = vst [vmem:[%s265 + $0xc] sm:$0xf] %v425
        %p430 = scmp.eq.s32.totalorder %s29, 0
        // Predicated region
        $region41: #{tpu_custom_call.1} parent=39 // pred_check
          %p431 = pneg %p430
        $region42: #{tpu_custom_call.1} parent=39 // pred_check_branch
          %433 = sbr.rel (%p431) target = $region44
        $region43: #{tpu_custom_call.1} parent=39 // pred_region
          %434 = vst [vmem:[#allocation2] sm:$0xff] 0.0
          %435 = vst [vmem:[#allocation2 + $0x8] sm:$0xff] 0.0
          %436 = vst [vmem:[#allocation2 + $0x10] sm:$0xff] 0.0
          %437 = vst [vmem:[#allocation2 + $0x18] sm:$0xff] 0.0
        $region44: #{tpu_custom_call.1} parent=39 // pred_fallthru
          _
        %v438 = vld [vmem:[#allocation2] sm:$0xff]
        %v439 = vld [vmem:[#allocation2 + $0x8] sm:$0xff]
        %v440 = vld [vmem:[#allocation2 + $0x10] sm:$0xff]
        %v441 = vld [vmem:[#allocation2 + $0x18] sm:$0xff]
        %v442 = vadd.f32 %v438, %v418
        %v443 = vadd.f32 %v439, %v419
        %v444 = vadd.f32 %v440, %v420
        %v445 = vadd.f32 %v441, %v421
        %446 = vst [vmem:[#allocation2] sm:$0xff] %v442
        %447 = vst [vmem:[#allocation2 + $0x8] sm:$0xff] %v443
        %448 = vst [vmem:[#allocation2 + $0x10] sm:$0xff] %v444
        %449 = vst [vmem:[#allocation2 + $0x18] sm:$0xff] %v445
        // Predicated region
        $region45: #{tpu_custom_call.1} parent=39 // pred_check
          %p450 = pneg %p430
        $region46: #{tpu_custom_call.1} parent=39 // pred_check_branch
          %452 = sbr.rel (%p450) target = $region48
        $region47: #{tpu_custom_call.1} parent=39 // pred_region
          %v453 = vld [vmem:[#allocation2] sm:$0xff]
          %v454 = vld [vmem:[#allocation2 + $0x8] sm:$0xff]
          %v455 = vld [vmem:[#allocation2 + $0x10] sm:$0xff]
          %v456 = vld [vmem:[#allocation2 + $0x18] sm:$0xff]
          %457 = vadd.xlane.f32.xlu0 %v453
          %v458 = vpop.xlane.xlu0 %457
          %459 = vadd.xlane.f32.xlu0 %v454
          %v460 = vpop.xlane.xlu0 %459
          %461 = vadd.xlane.f32.xlu0 %v455
          %v462 = vpop.xlane.xlu0 %461
          %463 = vadd.xlane.f32.xlu0 %v456
          %v464 = vpop.xlane.xlu0 %463
          %v469 = vlaneseq
          %v470 = vand.u32 %v469, 127
          %v471 = vperm.slane %v458, %v470
          %v472 = vadd.s32 %v470, 4294967288
          %v473 = vperm.slane %v460, %v472
          %vm474 = vcmask 130112
          %v475 = vsel %vm474, %v473, %v471
          %v476 = vadd.s32 %v470, 4294967280
          %v477 = vperm.slane %v462, %v476
          %vm478 = vcmask 195712
          %v479 = vsel %vm478, %v477, %v475
          %v480 = vadd.s32 %v470, 4294967272
          %v481 = vperm.slane %v464, %v480
          %vm482 = vcmask 261312
          %v483 = vsel %vm482, %v481, %v479
          %vm485 = vcmask 253952
          %486 = vst.msk [vmem:[%s271] sm:$0x1] %vm485, %v483
        $region48: #{tpu_custom_call.1} parent=39 // pred_fallthru
          _
        %s487 = sand.u32 %s158, 1
        %s488 = scalar_lea.sflag [#allocation4], %s487
        %s489 = sand.u32 %s158, 1
        %s490 = smul.addr %s489, 16
        %s491 = scalar_lea.vmem [#allocation3], %s490
        %s492 = sand.u32 %s184, 1
        %s493 = scalar_lea.sflag [#allocation6], %s492
        %s494 = sand.u32 %s184, 1
        %s495 = scalar_lea.vmem [#allocation5], %s494
        // Predicated region
        $region49: #{tpu_custom_call.1} parent=39 // pred_check
          %p496 = pneg %p168
        $region50: #{tpu_custom_call.1} parent=39 // pred_check_branch
          %498 = sbr.rel (%p496) target = $region52
        $region51: #{tpu_custom_call.1} parent=39 // pred_region
          %500 = vsyncadd %s488, 0
          %s501 = smul.addr %s28, 4
          %s502 = sadd.s32 %s29, %s501
          %s503 = smul.addr %s502, 4
          %s504 = scalar_lea.hbm %s5, %s503
          %s505 = sshll.u32 %s491, 4
          %s506 = int_to_ptr.vmem [resolvable:$true] %s505
          %s507 = sshll.u32 %s504, 4
          %s508 = int_to_ptr.hbm [resolvable:$true] %s507
          %513 = dma.vmem_to_hbm [thread:$0]  %s506, 256, %s508, %s488, 64, 64, 4
        $region52: #{tpu_custom_call.1} parent=39 // pred_fallthru
          _
        // Predicated region
        $region53: #{tpu_custom_call.1} parent=39 // pred_check
          %p514 = pneg %p194
        $region54: #{tpu_custom_call.1} parent=39 // pred_check_branch
          %516 = sbr.rel (%p514) target = $region56
        $region55: #{tpu_custom_call.1} parent=39 // pred_region
          %518 = vsyncadd %s493, 0
          %s519 = scalar_lea.hbm %s6, %s28
          %s521 = sshll.u32 %s495, 4
          %s522 = int_to_ptr.vmem [resolvable:$true] %s521
          %s523 = sshll.u32 %s519, 4
          %s524 = int_to_ptr.hbm [resolvable:$true] %s523
          %526 = dma.vmem_to_hbm [thread:$0]  %s522, 16, %s524, %s493
        $region56: #{tpu_custom_call.1} parent=39 // pred_fallthru
          _
      $region40: #{tpu_custom_call.1} parent=5 // pred_fallthru
        _
      %p527 = scmp.le.s32.totalorder 2, %s19
      // Predicated region
      $region57: #{tpu_custom_call.1} parent=5 // pred_check
        %p528 = pneg %p527
      $region58: #{tpu_custom_call.1} parent=5 // pred_check_branch
        %530 = sbr.rel (%p528) target = $region60
      $region59: #{tpu_custom_call.1} parent=5 // pred_region
        %s531 = ssub.s32 %s19, 2
        // Predicated region
        $region61: #{tpu_custom_call.1} parent=59 // pred_check
          %p532 = pneg %p174
        $region62: #{tpu_custom_call.1} parent=59 // pred_check_branch
          %534 = sbr.rel (%p532) target = $region64
        $region63: #{tpu_custom_call.1} parent=59 // pred_region
          %s535 = sand.u32 %s159, 1
          %s536 = scalar_lea.sflag [#allocation4], %s535
          %s537 = sand.u32 %s159, 1
          %s538 = smul.addr %s537, 16
          %s539 = scalar_lea.vmem [#allocation3], %s538
          %541 = dma.done %s536, 256
        $region64: #{tpu_custom_call.1} parent=59 // pred_fallthru
          _
        // Predicated region
        $region65: #{tpu_custom_call.1} parent=59 // pred_check
          %p542 = pneg %p200
        $region66: #{tpu_custom_call.1} parent=59 // pred_check_branch
          %544 = sbr.rel (%p542) target = $region68
        $region67: #{tpu_custom_call.1} parent=59 // pred_region
          %s545 = sand.u32 %s185, 1
          %s546 = scalar_lea.sflag [#allocation6], %s545
          %s547 = sand.u32 %s185, 1
          %s548 = scalar_lea.vmem [#allocation5], %s547
          %550 = dma.done %s546, 16
        $region68: #{tpu_custom_call.1} parent=59 // pred_fallthru
          _
      $region60: #{tpu_custom_call.1} parent=5 // pred_fallthru
        _
    $region6: #{tpu_custom_call.1} parent=1 // loop_footer
      %s23 = sadd.s32 1, %s19
    $region7: #{tpu_custom_call.1} parent=1 // loop_footer_branch
      %18 = sbr.rel target = $region3
    $region8: #{tpu_custom_call.1} parent=1 // loop_exit
      _
    %551 = vsyncpa [#allocation4], 1
    %s552 = scalar_lea.sflag [#allocation4], 1
    %553 = vsyncpa %s552, 1
    %554 = vsyncpa [#allocation6], 1
    %s555 = scalar_lea.sflag [#allocation6], 1
    %556 = vsyncpa %s555, 1

</llo_original>
